<compile_context>
chip_gen: v7x
topology: tpu7x:2x2x1
jax: 0.10.0
libtpu: 0.0.40
codegen_flags: <defaults>
</compile_context>

<pallas_src>
import jax
import jax.numpy as jnp
from jax.experimental import pallas as pl
from jax.experimental.pallas import tpu as pltpu


def _round_up(x, m):
    return (x + m - 1) // m * m


def _largest_divisor_leq(n, cap):
    cap = max(1, min(n, cap))
    for d in range(cap, 0, -1):
        if n % d == 0:
            return d
    return 1


def _pick_tiles(B, V, per_view_bytes, target_block=2 << 20):
    """Pick (batch_tile, view_chunk).

    The output tile is (tb, Fp), so tb must be a multiple of 8 (sublane rule)
    or equal to B.  Prefer >=2 batch blocks so the "parallel" axis can shard
    across both TensorCores on v7x; fall back to tb = B for small batches.
    The view chunk targets ~2 MiB x blocks so the pipeline has several steps;
    vt = 1 always divides V, so the block never silently overruns the budget.
    """
    tb = B
    for d in range(B // 2, 7, -1):
        if B % d == 0 and d % 8 == 0:
            tb = d
            break
    cap = max(1, target_block // max(1, tb * per_view_bytes))
    vt = _largest_divisor_leq(V, cap)
    return tb, vt


def mvcnn_kernel(x_ref, w_ref, b_ref, o_ref):
    """One (batch_tile, view_chunk) grid step.

    x_ref : (tb, vt, C, HW)  raw per-view image block (original layout)
    w_ref : (C, Fp)          projection weights with 1/(HW*V) folded in
    b_ref : (1, Fp)          bias scaled by 1/V (Fp = F padded to 128 lanes)
    o_ref : (tb, Fp)         running sum of per-view features == pooled_view
    """
    @pl.when(pl.program_id(1) == 0)
    def _():
        o_ref[...] = jnp.zeros_like(o_ref)

    tb, vt, c, _ = x_ref.shape
    fp = o_ref.shape[-1]

    # Spatial pooling: lane (XLU) reduction over HW; the 1/HW scale is already
    # folded into the weights so this is a plain sum.
    pooled = jnp.sum(x_ref[...], axis=-1)                    # (tb, vt, C)

    # Single MXU matmul over every view row in the chunk (K = C only).
    rows = pooled.reshape(tb * vt, c)                         # (tb*vt, C)
    feat = jnp.dot(rows, w_ref[...],
                   preferred_element_type=jnp.float32)        # (tb*vt, Fp)
    feat = jnp.maximum(feat + b_ref[...], 0.0)                # bias/ReLU once

    # Cross-view reduction (sublane sum) into the resident output accumulator.
    o_ref[...] += feat.reshape(tb, vt, fp).sum(axis=1)


def mvcnn_forward(x, w, b):
    """x: (batch, views, C, H, W) float32.  Returns (batch, feature_size)."""
    B, V, C, H, W = x.shape
    Cw, F = w.shape
    assert Cw == C
    HW = H * W
    Fp = _round_up(F, 128)

    # Fold the spatial mean (1/HW) and the cross-view mean (1/V) into the tiny
    # (C, Fp) projection: relu(z)/V == relu(z/V) for V > 0, so the kernel only
    # sums per-view features.  Feature dim padded to 128 lanes -> unmasked vst.
    wp = jnp.pad(w / (HW * V), ((0, 0), (0, Fp - F)))         # (C, Fp)
    bp = jnp.pad(b / V, (0, Fp - F)).reshape(1, Fp)           # (1, Fp)

    # Free reshape of the contiguous (C, H, W) tail — no host transpose,
    # no extra HBM pass over x.
    xf = x.reshape(B, V, C, HW)

    per_view_bytes = C * HW * 4
    tb, vt = _pick_tiles(B, V, per_view_bytes)
    grid = (B // tb, V // vt)

    # VMEM: every block (inputs AND output) is double-buffered by the pipeline.
    x_block = tb * vt * C * HW * 4
    w_bytes = C * Fp * 4
    b_bytes = Fp * 4
    o_block = tb * Fp * 4
    need = 2 * (x_block + w_bytes + b_bytes + o_block)
    vmem_limit = int(min(max(need + (4 << 20), 16 << 20), 48 << 20))

    cost = pl.CostEstimate(
        flops=2 * B * V * C * (HW + Fp),            # pool adds + projection
        transcendentals=0,
        bytes_accessed=B * V * C * HW * 4 + C * Fp * 4 + B * Fp * 4,
    )

    out = pl.pallas_call(
        mvcnn_kernel,
        out_shape=jax.ShapeDtypeStruct((B, Fp), jnp.float32),
        grid_spec=pltpu.PrefetchScalarGridSpec(
            num_scalar_prefetch=0,
            grid=grid,
            in_specs=[
                pl.BlockSpec((tb, vt, C, HW), lambda bi, vi: (bi, vi, 0, 0)),
                # Grid-invariant weight/bias are tiny now (C x Fp), so their
                # double-buffer cost is negligible and already in `need`.
                pl.BlockSpec((C, Fp), lambda bi, vi: (0, 0)),
                pl.BlockSpec((1, Fp), lambda bi, vi: (0, 0)),
            ],
            out_specs=pl.BlockSpec((tb, Fp), lambda bi, vi: (bi, 0)),
        ),
        compiler_params=pltpu.CompilerParams(
            dimension_semantics=("parallel", "arbitrary"),
            vmem_limit_bytes=vmem_limit,
        ),
        cost_estimate=cost,
    )(xf, wp, bp)

    return out[:, :F]


def mvcnn_reference(x, w, b):
    """Pure-JAX reference of the same forward pass (high-precision matmul)."""
    pooled = jnp.mean(x, axis=(-2, -1))                              # (B, V, C)
    proj = jnp.einsum("bvc,cf->bvf", pooled, w,
                      precision=jax.lax.Precision.HIGHEST)
    feat = jnp.maximum(proj + b[None, None, :], 0.0)                 # (B, V, F)
    return jnp.mean(feat, axis=1)                                    # (B, F)


if __name__ == "__main__":
    key = jax.random.PRNGKey(0)
    k_x, k_w, k_b = jax.random.split(key, 3)

    batch, views, C, H, W = 2, 6, 4, 16, 16
    feature_size = 32

    x = jax.random.normal(k_x, (batch, views, C, H, W), dtype=jnp.float32)
    w = jax.random.normal(k_w, (C, feature_size), dtype=jnp.float32) * 0.1
    b = jax.random.normal(k_b, (feature_size,), dtype=jnp.float32) * 0.01

    out = jax.block_until_ready(mvcnn_forward(x, w, b))
    ref = mvcnn_reference(x, w, b)

    assert out.shape == (batch, feature_size)
    max_diff = float(jnp.max(jnp.abs(out - ref)))
    assert jnp.allclose(out, ref, atol=1e-4, rtol=1e-3), (
        f"max abs diff {max_diff}")

    print("KERNEL_OK")
</pallas_src>

<mosaic_0001>
module attributes {stable_mosaic.version = 11 : i64} {
  func.func @mvcnn_kernel(%arg0: i32, %arg1: i32, %arg2: memref<2x6x4x256xf32, #tpu.memory_space<vmem>>, %arg3: memref<4x128xf32, #tpu.memory_space<vmem>>, %arg4: memref<1x128xf32, #tpu.memory_space<vmem>>, %arg5: memref<2x128xf32, #tpu.memory_space<vmem>>) attributes {dimension_semantics = [#tpu.dimension_semantics<parallel>, #tpu.dimension_semantics<arbitrary>], iteration_bounds = array<i64: 1, 1>, scalar_prefetch = 0 : i64, scratch_operands = 0 : i64, tpu.core_type = #tpu.core_type<tc>, window_params = [{transform_indices = @transform_0, window_bounds = array<i64: 2, 6, 4, 256>}, {pipeline_mode = #tpu.pipeline_mode<synchronous>, transform_indices = @transform_1, window_bounds = array<i64: 4, 128>}, {pipeline_mode = #tpu.pipeline_mode<synchronous>, transform_indices = @transform_2, window_bounds = array<i64: 1, 128>}, {transform_indices = @transform_3, window_bounds = array<i64: 2, 128>}]} {
    %c0_i32 = arith.constant 0 : i32
    %0 = arith.cmpi eq, %arg1, %c0_i32 : i32
    %1 = arith.extui %0 : i1 to i32
    %c0_i32_0 = arith.constant 0 : i32
    %2 = arith.cmpi ne, %1, %c0_i32_0 : i32
    scf.if %2 {
      %cst_15 = arith.constant 0.000000e+00 : f32
      %18 = vector.broadcast %cst_15 : f32 to vector<2x128xf32>
      %c0_16 = arith.constant 0 : index
      %c0_17 = arith.constant 0 : index
      %19 = vector.load %arg5[%c0_16, %c0_17] : memref<2x128xf32, #tpu.memory_space<vmem>>, vector<2x128xf32>
      tpu.vector_store %arg5[%c0_16, %c0_17], %18 {strides = array<i32>} : memref<2x128xf32, #tpu.memory_space<vmem>>, vector<2x128xf32>,
    } else {
    }
    %c0 = arith.constant 0 : index
    %c0_1 = arith.constant 0 : index
    %c0_2 = arith.constant 0 : index
    %c0_3 = arith.constant 0 : index
    %3 = vector.load %arg2[%c0, %c0_1, %c0_2, %c0_3] : memref<2x6x4x256xf32, #tpu.memory_space<vmem>>, vector<2x6x4x256xf32>
    %cst = arith.constant dense<0.000000e+00> : vector<2x6x4xf32>
    %4 = vector.multi_reduction <add>, %3, %cst [3] : vector<2x6x4x256xf32> to vector<2x6x4xf32>
    %5 = vector.shape_cast %4 : vector<2x6x4xf32> to vector<12x4xf32>
    %c0_4 = arith.constant 0 : index
    %c0_5 = arith.constant 0 : index
    %6 = vector.load %arg3[%c0_4, %c0_5] : memref<4x128xf32, #tpu.memory_space<vmem>>, vector<4x128xf32>
    %cst_6 = arith.constant dense<0.000000e+00> : vector<12x128xf32>
    %7 = tpu.matmul %5, %6, %cst_6 {dimension_numbers = #tpu.dot_dimension_numbers<[1], [0], [0], [1], [0, 0, 1, 1], [], []>} : vector<12x4xf32>, vector<4x128xf32>, vector<12x128xf32> -> vector<12x128xf32>
    %c0_7 = arith.constant 0 : index
    %c0_8 = arith.constant 0 : index
    %8 = vector.load %arg4[%c0_7, %c0_8] : memref<1x128xf32, #tpu.memory_space<vmem>>, vector<1x128xf32>
    %9 = vector.broadcast %8 : vector<1x128xf32> to vector<12x128xf32>
    %10 = arith.addf %7, %9 : vector<12x128xf32>
    %cst_9 = arith.constant 0.000000e+00 : f32
    %11 = vector.broadcast %cst_9 : f32 to vector<12x128xf32>
    %12 = arith.maximumf %10, %11 : vector<12x128xf32>
    %c0_10 = arith.constant 0 : index
    %c0_11 = arith.constant 0 : index
    %13 = vector.load %arg5[%c0_10, %c0_11] : memref<2x128xf32, #tpu.memory_space<vmem>>, vector<2x128xf32>
    %14 = vector.shape_cast %12 : vector<12x128xf32> to vector<2x6x128xf32>
    %cst_12 = arith.constant dense<0.000000e+00> : vector<2x128xf32>
    %15 = vector.multi_reduction <add>, %14, %cst_12 [1] : vector<2x6x128xf32> to vector<2x128xf32>
    %16 = arith.addf %13, %15 : vector<2x128xf32>
    %c0_13 = arith.constant 0 : index
    %c0_14 = arith.constant 0 : index
    %17 = vector.load %arg5[%c0_13, %c0_14] : memref<2x128xf32, #tpu.memory_space<vmem>>, vector<2x128xf32>
    tpu.vector_store %arg5[%c0_13, %c0_14], %16 {strides = array<i32>} : memref<2x128xf32, #tpu.memory_space<vmem>>, vector<2x128xf32>,
    return
  }
  func.func @transform_0(%arg0: i32, %arg1: i32) -> (i32, i32, i32, i32) {
    %c0_i32 = arith.constant 0 : i32
    %c0_i32_0 = arith.constant 0 : i32
    %c0_i32_1 = arith.constant 0 : i32
    return %arg0, %arg1, %c0_i32, %c0_i32_0 : i32, i32, i32, i32
  }
  func.func @transform_1(%arg0: i32, %arg1: i32) -> (i32, i32) {
    %c0_i32 = arith.constant 0 : i32
    %c0_i32_0 = arith.constant 0 : i32
    %c0_i32_1 = arith.constant 0 : i32
    return %c0_i32, %c0_i32_0 : i32, i32
  }
  func.func @transform_2(%arg0: i32, %arg1: i32) -> (i32, i32) {
    %c0_i32 = arith.constant 0 : i32
    %c0_i32_0 = arith.constant 0 : i32
    %c0_i32_1 = arith.constant 0 : i32
    return %c0_i32, %c0_i32_0 : i32, i32
  }
  func.func @transform_3(%arg0: i32, %arg1: i32) -> (i32, i32) {
    %c0_i32 = arith.constant 0 : i32
    %c0_i32_0 = arith.constant 0 : i32
    return %arg0, %c0_i32 : i32, i32
  }
}

</mosaic_0001>

<llo_original>
// kernel: tpu_custom_call.1
$region0: #{tpu_custom_call.1}
  #allocation0 [shape = 'u32[]', space=smem, size = 0x4, offset = 0x4, fixed_abs, tag = 'smem constant byte address 0x4 - core index']
  #allocation1 [shape = 'u32[144,128]{1,0:T(1,128)}', space=vmem, size = 0x12000, scoped, tag = 'internal scratch']
  %s0 = inlined_call_operand.hbm [shape: f32[2,6,4,256], index: 0, kind: input, shape index: {}]
  %s1 = inlined_call_operand.hbm [shape: f32[4,128], index: 1, kind: input, shape index: {}]
  %s2 = inlined_call_operand.vmem [shape: f32[1,128], index: 2, kind: input, shape index: {}]
  %s3 = inlined_call_operand.hbm [shape: f32[2,128], index: 3, kind: output, shape index: {}]
  %s4 = sld [smem:[#allocation0]]
  $region34: #{tpu_custom_call.1} parent=0
    _
  %s6 = ssub.s32 1, %s4
  %s7 = scalar_select 0, %s6, %s4
  $region1: #{tpu_custom_call.1} parent=0
    #allocation2 [shape = 'u8[49152]{0}', space=vmem, size = 0xc000, scoped, tag = 'input window, operand 0, single buffered']
    #allocation3 [shape = 's32[1]{0}', space=sflag, size = 0x4, scoped, tag = 'scoped memory for tpu_custom_call.1']
    #allocation4 [shape = 's32[1]{0}', space=sflag, size = 0x4, scoped, tag = 'scoped memory for tpu_custom_call.1']
    #allocation5 [shape = 'u8[2048]{0}', space=vmem, size = 0x800, scoped, tag = 'input window, operand 1, single buffered']
    #allocation6 [shape = 's32[1]{0}', space=sflag, size = 0x4, scoped, tag = 'scoped memory for tpu_custom_call.1']
    #allocation7 [shape = 'u8[1024]{0}', space=vmem, size = 0x400, scoped, tag = 'output window, operand 0, single buffered']
    %8 = vsyncpa [#allocation3], 0
    %9 = vsyncpa [#allocation6], 0
    %10 = vsyncpa [#allocation4], 0
    // Predicated region
    $region2: #{tpu_custom_call.1} parent=1 // pred_check
      _
    $region3: #{tpu_custom_call.1} parent=1 // pred_check_branch
      %12 = sbr.rel (0) target = $region5
    $region4: #{tpu_custom_call.1} parent=1 // pred_region
      %s14 = ssub.s32 1536, 1536
      %15 = vsyncadd [#allocation3], %s14
      %s16 = sshll.u32 [#allocation2], 4
      %s17 = int_to_ptr.vmem [resolvable:$true] %s16
      %22 = dma.hbm_to_vmem [thread:$0]  %s0, 1536, %s17, [#allocation3], 128, 128, 8
    $region5: #{tpu_custom_call.1} parent=1 // pred_fallthru
      _
    // Predicated region
    $region6: #{tpu_custom_call.1} parent=1 // pred_check
      _
    $region7: #{tpu_custom_call.1} parent=1 // pred_check_branch
      %24 = sbr.rel (0) target = $region9
    $region8: #{tpu_custom_call.1} parent=1 // pred_region
      %s26 = ssub.s32 64, 64
      %27 = vsyncadd [#allocation6], %s26
      %s29 = sshll.u32 [#allocation5], 4
      %s30 = int_to_ptr.vmem [resolvable:$true] %s29
      %32 = dma.hbm_to_vmem [thread:$0]  %s1, 64, %s30, [#allocation6]
    $region9: #{tpu_custom_call.1} parent=1 // pred_fallthru
      _
    // Predicated region
    $region10: #{tpu_custom_call.1} parent=1 // pred_check
      _
    $region11: #{tpu_custom_call.1} parent=1 // pred_check_branch
      %34 = sbr.rel (0) target = $region13
    $region12: #{tpu_custom_call.1} parent=1 // pred_region
      _
    $region13: #{tpu_custom_call.1} parent=1 // pred_fallthru
      _
    // Predicated region
    $region14: #{tpu_custom_call.1} parent=1 // pred_check
      _
    $region15: #{tpu_custom_call.1} parent=1 // pred_check_branch
      %36 = sbr.rel (0) target = $region17
    $region16: #{tpu_custom_call.1} parent=1 // pred_region
      %37 = dma.done [#allocation3], 1536
    $region17: #{tpu_custom_call.1} parent=1 // pred_fallthru
      _
    // Predicated region
    $region18: #{tpu_custom_call.1} parent=1 // pred_check
      _
    $region19: #{tpu_custom_call.1} parent=1 // pred_check_branch
      %39 = sbr.rel (0) target = $region21
    $region20: #{tpu_custom_call.1} parent=1 // pred_region
      %40 = dma.done [#allocation6], 64
    $region21: #{tpu_custom_call.1} parent=1 // pred_fallthru
      _
    %p41 = scmp.eq.s32.totalorder 0, 0
    // Predicated region
    $region22: #{tpu_custom_call.1} parent=1 // pred_check
      %p42 = pneg %p41
    $region23: #{tpu_custom_call.1} parent=1 // pred_check_branch
      %44 = sbr.rel (%p42) target = $region25
    $region24: #{tpu_custom_call.1} parent=1 // pred_region
      %45 = vst [vmem:[#allocation7] sm:$0x3] 0.0
    $region25: #{tpu_custom_call.1} parent=1 // pred_fallthru
      _
    %v46 = vld [vmem:[#allocation2] sm:$0xff]
    %v47 = vld [vmem:[#allocation2 + $0x8] sm:$0xff]
    %v48 = vld [vmem:[#allocation2 + $0x10] sm:$0xff]
    %v49 = vld [vmem:[#allocation2 + $0x18] sm:$0xff]
    %v50 = vld [vmem:[#allocation2 + $0x20] sm:$0xff]
    %v51 = vld [vmem:[#allocation2 + $0x28] sm:$0xff]
    %v52 = vld [vmem:[#allocation2 + $0x30] sm:$0xff]
    %v53 = vld [vmem:[#allocation2 + $0x38] sm:$0xff]
    %v54 = vld [vmem:[#allocation2 + $0x40] sm:$0xff]
    %v55 = vld [vmem:[#allocation2 + $0x48] sm:$0xff]
    %v56 = vld [vmem:[#allocation2 + $0x50] sm:$0xff]
    %v57 = vld [vmem:[#allocation2 + $0x58] sm:$0xff]
    %v70 = vcombine.high %v46, %v46
    %v71 = vcombine.high %v47, %v47
    %v72 = vcombine.high %v48, %v48
    %v73 = vcombine.high %v49, %v49
    %v74 = vcombine.high %v50, %v50
    %v75 = vcombine.high %v51, %v51
    %v76 = vcombine.high %v52, %v52
    %v77 = vcombine.high %v53, %v53
    %v78 = vcombine.high %v54, %v54
    %v79 = vcombine.high %v55, %v55
    %v80 = vcombine.high %v56, %v56
    %v81 = vcombine.high %v57, %v57
    %vm94 = vcmask 1043456
    %v95 = vsel %vm94, %v46, 0.0
    %v96 = vsel %vm94, %v70, 0.0
    %v97 = vadd.f32 %v95, %v96
    %98 = vadd.xlane.f32.xlu0 %v97
    %v99 = vpop.xlane.xlu0 %98
    %v100 = vsel %vm94, %v47, 0.0
    %v101 = vsel %vm94, %v71, 0.0
    %v102 = vadd.f32 %v100, %v101
    %103 = vadd.xlane.f32.xlu0 %v102
    %v104 = vpop.xlane.xlu0 %103
    %v105 = vsel %vm94, %v48, 0.0
    %v106 = vsel %vm94, %v72, 0.0
    %v107 = vadd.f32 %v105, %v106
    %108 = vadd.xlane.f32.xlu0 %v107
    %v109 = vpop.xlane.xlu0 %108
    %v110 = vsel %vm94, %v49, 0.0
    %v111 = vsel %vm94, %v73, 0.0
    %v112 = vadd.f32 %v110, %v111
    %113 = vadd.xlane.f32.xlu0 %v112
    %v114 = vpop.xlane.xlu0 %113
    %v115 = vsel %vm94, %v50, 0.0
    %v116 = vsel %vm94, %v74, 0.0
    %v117 = vadd.f32 %v115, %v116
    %118 = vadd.xlane.f32.xlu0 %v117
    %v119 = vpop.xlane.xlu0 %118
    %v120 = vsel %vm94, %v51, 0.0
    %v121 = vsel %vm94, %v75, 0.0
    %v122 = vadd.f32 %v120, %v121
    %123 = vadd.xlane.f32.xlu0 %v122
    %v124 = vpop.xlane.xlu0 %123
    %v125 = vsel %vm94, %v52, 0.0
    %v126 = vsel %vm94, %v76, 0.0
    %v127 = vadd.f32 %v125, %v126
    %128 = vadd.xlane.f32.xlu0 %v127
    %v129 = vpop.xlane.xlu0 %128
    %v130 = vsel %vm94, %v53, 0.0
    %v131 = vsel %vm94, %v77, 0.0
    %v132 = vadd.f32 %v130, %v131
    %133 = vadd.xlane.f32.xlu0 %v132
    %v134 = vpop.xlane.xlu0 %133
    %v135 = vsel %vm94, %v54, 0.0
    %v136 = vsel %vm94, %v78, 0.0
    %v137 = vadd.f32 %v135, %v136
    %138 = vadd.xlane.f32.xlu0 %v137
    %v139 = vpop.xlane.xlu0 %138
    %v140 = vsel %vm94, %v55, 0.0
    %v141 = vsel %vm94, %v79, 0.0
    %v142 = vadd.f32 %v140, %v141
    %143 = vadd.xlane.f32.xlu0 %v142
    %v144 = vpop.xlane.xlu0 %143
    %v145 = vsel %vm94, %v56, 0.0
    %v146 = vsel %vm94, %v80, 0.0
    %v147 = vadd.f32 %v145, %v146
    %148 = vadd.xlane.f32.xlu0 %v147
    %v149 = vpop.xlane.xlu0 %148
    %v150 = vsel %vm94, %v57, 0.0
    %v151 = vsel %vm94, %v81, 0.0
    %v152 = vadd.f32 %v150, %v151
    %153 = vadd.xlane.f32.xlu0 %v152
    %v154 = vpop.xlane.xlu0 %153
    %v155 = vld [vmem:[#allocation5] sm:$0xf]
    %v156 = vld [vmem:[%s2] sm:$0x1]
    %v158 = vlaneseq
    %v159 = vshrl.u32 %v158, 7
    %v160 = vsub.s32 0, %v159
    %v161 = vrot.slane %v156, %v160
    %v175 = vlaneseq
    %v176 = vand.u32 %v175, 127
    %v177 = vlaneseq
    %v178 = vshrl.u32 %v177, 7
    %v179 = vsub.s32 %v176, %v178
    %v180 = vrot.slane %v99, %v179
    %v181 = vlaneseq
    %v182 = vshrl.u32 %v181, 7
    %v183 = vsub.s32 %v176, %v182
    %v184 = vrot.slane %v104, %v183
    %v185 = vlaneseq
    %v186 = vshrl.u32 %v185, 7
    %v187 = vsub.s32 %v176, %v186
    %v188 = vrot.slane %v109, %v187
    %v189 = vlaneseq
    %v190 = vshrl.u32 %v189, 7
    %v191 = vsub.s32 %v176, %v190
    %v192 = vrot.slane %v114, %v191
    %v193 = vlaneseq
    %v194 = vshrl.u32 %v193, 7
    %v195 = vsub.s32 %v176, %v194
    %v196 = vrot.slane %v119, %v195
    %v197 = vlaneseq
    %v198 = vshrl.u32 %v197, 7
    %v199 = vsub.s32 %v176, %v198
    %v200 = vrot.slane %v124, %v199
    %v201 = vlaneseq
    %v202 = vshrl.u32 %v201, 7
    %v203 = vsub.s32 %v176, %v202
    %v204 = vrot.slane %v129, %v203
    %v205 = vlaneseq
    %v206 = vshrl.u32 %v205, 7
    %v207 = vsub.s32 %v176, %v206
    %v208 = vrot.slane %v134, %v207
    %v209 = vlaneseq
    %v210 = vshrl.u32 %v209, 7
    %v211 = vsub.s32 %v176, %v210
    %v212 = vrot.slane %v139, %v211
    %v213 = vlaneseq
    %v214 = vshrl.u32 %v213, 7
    %v215 = vsub.s32 %v176, %v214
    %v216 = vrot.slane %v144, %v215
    %v217 = vlaneseq
    %v218 = vshrl.u32 %v217, 7
    %v219 = vsub.s32 %v176, %v218
    %v220 = vrot.slane %v149, %v219
    %v221 = vlaneseq
    %v222 = vshrl.u32 %v221, 7
    %v223 = vsub.s32 %v176, %v222
    %v224 = vrot.slane %v154, %v223
    %vm225 = vcmask 1041409
    %v226 = vsel %vm225, %v184, %v180
    %vm227 = vcmask 1042434
    %v228 = vsel %vm227, %v188, %v226
    %vm229 = vcmask 1043459
    %v230 = vsel %vm229, %v192, %v228
    %vm231 = vcmask 1044484
    %v232 = vsel %vm231, %v196, %v230
    %vm233 = vcmask 1045509
    %v234 = vsel %vm233, %v200, %v232
    %vm235 = vcmask 1046534
    %v236 = vsel %vm235, %v204, %v234
    %vm237 = vcmask 1047559
    %v238 = vsel %vm237, %v208, %v236
    %v239 = vsel %vm225, %v216, %v212
    %v240 = vsel %vm227, %v220, %v239
    %v241 = vsel %vm229, %v224, %v240
    %vm242 = vcmask 31744
    %v243 = vsel %vm242, %v238, 0
    %v245 = vsel %vm242, %v241, 0
    %v248 = vsel %vm94, %v155, 0
    %250 = vmatprep.subr.mxu0 0.0
    %251 = vmatpush1.msra.mxu0 %v248
    %252 = vmatprep.subr.mxu0 0.0
    %253 = vmatpush1.msra.mxu0 0.0
    %254 = vmatprep.subr.mxu0 0.0
    %255 = vmatpush1.msra.mxu0 0.0
    %256 = vmatprep.subr.mxu0 0.0
    %257 = vmatpush1.msra.mxu0 0.0
    %258 = vmatprep.subr.mxu0 0.0
    %259 = vmatpush1.msra.mxu0 0.0
    %260 = vmatprep.subr.mxu0 0.0
    %261 = vmatpush1.msra.mxu0 0.0
    %262 = vmatprep.subr.mxu0 0.0
    %263 = vmatpush1.msra.mxu0 0.0
    %264 = vmatprep.subr.mxu0 0.0
    %265 = vmatpush1.msra.mxu0 0.0
    %266 = vmatprep.subr.mxu0 0.0
    %267 = vmatpush1.msra.mxu0 0.0
    %268 = vmatprep.subr.mxu0 0.0
    %269 = vmatpush1.msra.mxu0 0.0
    %270 = vmatprep.subr.mxu0 0.0
    %271 = vmatpush1.msra.mxu0 0.0
    %272 = vmatprep.subr.mxu0 0.0
    %273 = vmatpush1.msra.mxu0 0.0
    %274 = vmatprep.subr.mxu0 0.0
    %275 = vmatpush1.msra.mxu0 0.0
    %276 = vmatprep.subr.mxu0 0.0
    %277 = vmatpush1.msra.mxu0 0.0
    %278 = vmatprep.subr.mxu0 0.0
    %279 = vmatpush1.msra.mxu0 0.0
    %280 = vmatprep.subr.mxu0 0.0
    %281 = vmatpush1.msra.mxu0 0.0
    %282 = vmatprep.subr.mxu0 0.0
    %283 = vmatpush1.msra.mxu0 0.0
    %284 = vmatprep.subr.mxu0 0.0
    %285 = vmatpush1.msra.mxu0 0.0
    %286 = vmatprep.subr.mxu0 0.0
    %287 = vmatpush1.msra.mxu0 0.0
    %288 = vmatprep.subr.mxu0 0.0
    %289 = vmatpush1.msra.mxu0 0.0
    %290 = vmatprep.subr.mxu0 0.0
    %291 = vmatpush1.msra.mxu0 0.0
    %292 = vmatprep.subr.mxu0 0.0
    %293 = vmatpush1.msra.mxu0 0.0
    %294 = vmatprep.subr.mxu0 0.0
    %295 = vmatpush1.msra.mxu0 0.0
    %296 = vmatprep.subr.mxu0 0.0
    %297 = vmatpush1.msra.mxu0 0.0
    %298 = vmatprep.subr.mxu0 0.0
    %299 = vmatpush1.msra.mxu0 0.0
    %300 = vmatprep.subr.mxu0 0.0
    %301 = vmatpush1.msra.mxu0 0.0
    %302 = vmatprep.subr.mxu0 0.0
    %303 = vmatpush1.msra.mxu0 0.0
    %304 = vmatprep.subr.mxu0 0.0
    %305 = vmatpush1.msra.mxu0 0.0
    %306 = vmatprep.subr.mxu0 0.0
    %307 = vmatpush1.msra.mxu0 0.0
    %308 = vmatprep.subr.mxu0 0.0
    %309 = vmatpush1.msra.mxu0 0.0
    %310 = vmatprep.subr.mxu0 0.0
    %311 = vmatpush1.msra.mxu0 0.0
    %312 = vmatprep.subr.mxu0 0.0
    %313 = vmatpush1.msra.mxu0 0.0
    %314 = vmatprep.mubr.f32.mxu0 0.0
    %315 = vmatmul.mubr.f32.gmra.mrb[0].mxu0 %v243
    %v316 = vpop.f32.mrb[0].mxu0
    %v317 = vadd.f32 %v161, %v316
    %v318 = vpop.f32.mrb[0].mxu0
    %319 = vmatprep.mubr.f32.mxu0 0.0
    %320 = vmatmul.mubr.f32.gmra.mrb[0].mxu0 %v245
    %v321 = vpop.f32.mrb[0].mxu0
    %v322 = vadd.f32 %v161, %v321
    %v323 = vpop.f32.mrb[0].mxu0
    %324 = vdwg.mxu0
    %v325 = vmax.f32 %v317, 0.0
    %v326 = vmax.f32 %v322, 0.0
    %v327 = vld [vmem:[#allocation7] sm:$0x3]
    %v330 = vcombine.high %v325, %v325
    %v332 = vunpack.c.l.s4 1983009808
    %v333 = vunpack.c.0.s8 %v332
    %v334 = vlaneseq
    %v335 = vshrl.u32 %v334, 7
    %v336 = vsub.s32 %v333, %v335
    %v337 = vrot.slane %v325, %v336
    %v339 = vunpack.c.l.s4 1983009808
    %v340 = vunpack.c.0.s8 %v339
    %v341 = vlaneseq
    %v342 = vshrl.u32 %v341, 7
    %v343 = vsub.s32 %v340, %v342
    %v344 = vrot.slane %v330, %v343
    %v345 = vcombine.high %v337, %v337
    %v346 = vcombine.high %v344, %v344
    %v348 = vunpack.c.l.s4 1983009808
    %v349 = vunpack.c.0.s8 %v348
    %v350 = vlaneseq
    %v351 = vshrl.u32 %v350, 7
    %v352 = vsub.s32 %v349, %v351
    %v353 = vrot.slane %v326, %v352
    %v354 = vcombine.high %v353, %v353
    %v355 = vcombine.low %v337, %v345
    %v357 = vunpack.c.l.s4 1983009808
    %v358 = vunpack.c.0.s8 %v357
    %v359 = vlaneseq
    %v360 = vshrl.u32 %v359, 7
    %v361 = vsub.s32 %v358, %v360
    %v362 = vrot.slane %v355, %v361
    %v364 = vunpack.c.l.s4 1983009808
    %v365 = vunpack.c.0.s8 %v364
    %v366 = vlaneseq
    %v367 = vshrl.u32 %v366, 7
    %v368 = vsub.s32 %v365, %v367
    %v369 = vrot.slane %v344, %v368
    %v370 = vcombine.low %v362, %v369
    %v371 = vcombine.low %v346, %v353
    %v373 = vunpack.c.l.s4 1983009808
    %v374 = vunpack.c.0.s8 %v373
    %v375 = vlaneseq
    %v376 = vshrl.u32 %v375, 7
    %v377 = vsub.s32 %v374, %v376
    %v378 = vrot.slane %v371, %v377
    %v380 = vunpack.c.l.s4 1983009808
    %v381 = vunpack.c.0.s8 %v380
    %v382 = vlaneseq
    %v383 = vshrl.u32 %v382, 7
    %v384 = vsub.s32 %v381, %v383
    %v385 = vrot.slane %v354, %v384
    %v386 = vcombine.low %v378, %v385
    %vm389 = vcmask 1045504
    %v390 = vsel %vm389, %v370, 0.0
    %v391 = vrot.slane %v390, 4
    %v392 = vadd.f32 %v390, %v391
    %v393 = vrot.slane %v392, 2
    %v394 = vadd.f32 %v392, %v393
    %v395 = vrot.slane %v394, 1
    %v396 = vadd.f32 %v394, %v395
    %v397 = vsel %vm389, %v386, 0.0
    %v398 = vrot.slane %v397, 4
    %v399 = vadd.f32 %v397, %v398
    %v400 = vrot.slane %v399, 2
    %v401 = vadd.f32 %v399, %v400
    %v402 = vrot.slane %v401, 1
    %v403 = vadd.f32 %v401, %v402
    %v406 = vsel %vm225, %v403, %v396
    %v408 = vadd.f32 %v327, %v406
    %409 = vst [vmem:[#allocation7] sm:$0x3] %v408
    // Predicated region
    $region26: #{tpu_custom_call.1} parent=1 // pred_check
      _
    $region27: #{tpu_custom_call.1} parent=1 // pred_check_branch
      %411 = sbr.rel (0) target = $region29
    $region28: #{tpu_custom_call.1} parent=1 // pred_region
      %s413 = ssub.s32 32, 32
      %414 = vsyncadd [#allocation4], %s413
      %s416 = sshll.u32 [#allocation7], 4
      %s417 = int_to_ptr.vmem [resolvable:$true] %s416
      %419 = dma.vmem_to_hbm [thread:$0]  %s417, 32, %s3, [#allocation4]
    $region29: #{tpu_custom_call.1} parent=1 // pred_fallthru
      _
    // Predicated region
    $region30: #{tpu_custom_call.1} parent=1 // pred_check
      _
    $region31: #{tpu_custom_call.1} parent=1 // pred_check_branch
      %421 = sbr.rel (0) target = $region33
    $region32: #{tpu_custom_call.1} parent=1 // pred_region
      %422 = dma.done [#allocation4], 32
    $region33: #{tpu_custom_call.1} parent=1 // pred_fallthru
      _
    %423 = vsyncpa [#allocation3], 1
    %424 = vsyncpa [#allocation6], 1
    %425 = vsyncpa [#allocation4], 1

</llo_original>
